<compile_context>
chip_gen: v5e
topology: v5e:2x2
jax: 0.10.0
libtpu: 0.0.40
codegen_flags: <defaults>
</compile_context>

<pallas_src>
import functools

import jax
import jax.numpy as jnp
import numpy as np
from jax.experimental import pallas as pl
from jax.experimental.pallas import tpu as pltpu


# ----------------------------- Pallas kernel -------------------------------

def fused_forward_kernel(idx_ref, m_ref, ch_ref, out_ref, *, bag_size):
    """Fused EmbeddingBag(mean)+Linear (pre-folded) -> BatchNorm1d -> ReLU.

    idx_ref: VMEM (W*S, 1) int32   token indices of batch element 0
    m_ref:   VMEM (V, OP)  float32 folded (table @ fc_w.T) / S, lane-padded
    ch_ref:  VMEM (3, OP)  float32 rows = [fc bias, bn gamma, bn beta] (padded)
    out_ref: VMEM (W, OP)  float32 lane-dense output (valid cols sliced outside)
    """
    WS = idx_ref.shape[0]                 # W * S tokens
    V = m_ref.shape[0]                    # vocab size
    W = out_ref.shape[0]                  # bags (output rows)
    S = bag_size

    # --- one-hot token -> vocab matrix on the VPU (no scalar gathers) ---------
    idx = idx_ref[...]                                                # (WS, 1)
    vocab_iota = jax.lax.broadcasted_iota(jnp.int32, (WS, V), 1)
    onehot = (vocab_iota == idx).astype(jnp.float32)                  # (WS, V)

    # --- static bag-pooling matrix: pool[w, t] = 1 iff token t belongs to bag w
    row = jax.lax.broadcasted_iota(jnp.int32, (W, WS), 0)
    col = jax.lax.broadcasted_iota(jnp.int32, (W, WS), 1)
    pool = jnp.logical_and(col >= row * S, col < (row + 1) * S).astype(jnp.float32)

    # --- counts @ folded weights (two tiny MXU ops), + fc bias ----------------
    counts = jnp.dot(pool, onehot, preferred_element_type=jnp.float32)    # (W, V)
    h = jnp.dot(counts, m_ref[...], preferred_element_type=jnp.float32)   # (W, OP)
    h = h + ch_ref[0:1, :]

    # --- BatchNorm1d with batch statistics (training mode), eps=1e-5, + ReLU --
    # TODO(synk): eval-mode BatchNorm (running_mean/var) would need those stats
    # passed in; the reference module as written uses batch statistics here.
    inv_w = 1.0 / W
    mean = jnp.sum(h, axis=0, keepdims=True) * inv_w                      # (1, OP)
    hc = h - mean
    var = jnp.sum(hc * hc, axis=0, keepdims=True) * inv_w                 # centered
    scale = ch_ref[1:2, :] * jax.lax.rsqrt(var + 1e-5)                    # gamma folded
    out_ref[...] = jnp.maximum(hc * scale + ch_ref[2:3, :], 0.0)


# ------------------------------ JAX wrappers --------------------------------

def prepare_params(params, *, bag_size):
    """One-time (init) fold of the embedding table into the FC weight.

    Returns lane-padded, kernel-ready arrays so the per-call jit body does no
    parameter packing at all.
    """
    table = params["embedding"].astype(jnp.float32)        # (V, E)
    fc_w = params["fc_w"].astype(jnp.float32)              # (O, E)
    out_dim = fc_w.shape[0]
    o_pad = ((out_dim + 127) // 128) * 128                 # lane-dense width

    # Folded matrix: bag-mean then Linear  ==  counts @ (table @ W.T / S).
    m = (table @ fc_w.T) * (1.0 / bag_size)                # (V, O)
    m_pad = jnp.zeros((table.shape[0], o_pad), jnp.float32).at[:, :out_dim].set(m)

    # Padded channels get bias=0, gamma=0, beta=0 -> output exactly 0, sliced off.
    ch = jnp.zeros((3, o_pad), jnp.float32)
    ch = ch.at[0, :out_dim].set(params["fc_b"].astype(jnp.float32))
    ch = ch.at[1, :out_dim].set(params["bn_gamma"].astype(jnp.float32))
    ch = ch.at[2, :out_dim].set(params["bn_beta"].astype(jnp.float32))
    return m_pad, ch, out_dim


@functools.partial(jax.jit, static_argnames=("bag_size", "out_dim"))
def cps_tcn_forward(texts, offsets, m_fold, ch, *, bag_size, out_dim):
    """texts: [B, W*bag_size] int, offsets: [B, W] int (fixed-stride bags)."""
    # TODO(synk): offsets are assumed fixed-stride (arange(W)*bag_size), matching
    # how the module is driven; ragged EmbeddingBag offsets are not supported.
    del offsets
    _, L = texts.shape
    W = L // bag_size

    # Only batch element 0 feeds the output (TCN branch is multiplied by 0.0).
    # TODO(synk): TemporalConvNet (y_sequence) is scaled by 0.0 in the reference
    # forward and its definition was not provided, so the TCN stack is elided;
    # it cannot affect the output for finite activations.
    idx0 = texts[0].astype(jnp.int32).reshape(W * bag_size, 1)

    o_pad = m_fold.shape[1]
    # TODO(synk): for realistic vocab sizes, keep the folded matrix in HBM
    # (memory_space=pl.ANY + manual DMA), budget VMEM per chip generation
    # (vmem_limit_bytes), and add a "parallel" grid axis over W-blocks for v7x.
    y_pad = pl.pallas_call(
        functools.partial(fused_forward_kernel, bag_size=bag_size),
        out_shape=jax.ShapeDtypeStruct((W, o_pad), jnp.float32),
        in_specs=[
            pl.BlockSpec(memory_space=pltpu.MemorySpace.VMEM),   # token indices
            pl.BlockSpec(memory_space=pltpu.MemorySpace.VMEM),   # folded weights
            pl.BlockSpec(memory_space=pltpu.MemorySpace.VMEM),   # bias/gamma/beta
        ],
        out_specs=pl.BlockSpec(memory_space=pltpu.MemorySpace.VMEM),
    )(idx0, m_fold, ch)

    return y_pad[:, :out_dim]                                    # (W, O)


def reference_forward(texts, params, bag_size):
    """Pure-JAX reference mirroring the PyTorch forward."""
    B, L = texts.shape
    W = L // bag_size
    table = params["embedding"]
    emb_tokens = table[texts.reshape(B, W, bag_size)].mean(axis=2)   # (B, W, E)
    x0 = emb_tokens[0]
    h = x0 @ params["fc_w"].T + params["fc_b"]
    mean = h.mean(axis=0)
    var = jnp.mean((h - mean) ** 2, axis=0)
    xn = (h - mean) / jnp.sqrt(var + 1e-5)
    y = xn * params["bn_gamma"] + params["bn_beta"]
    return jnp.maximum(y, 0.0)


# --------------------------------- main -------------------------------------

if __name__ == "__main__":
    # Small shapes consistent with the module.
    vocab_size = 64        # V
    embed_dim = 32         # E (parameters.embedding_size)
    output_size = 11       # number of classes (per module docstring)
    batch = 2              # B
    window = 8             # W (bags per batch element)
    bag_size = 4           # S (tokens per bag)

    key = jax.random.PRNGKey(0)
    k_emb, k_w, k_b, k_idx = jax.random.split(key, 4)

    # Deterministic parameter init (mirrors the PyTorch module's init scheme).
    bound = 1.0 / np.sqrt(embed_dim)
    params = {
        "embedding": jax.random.uniform(k_emb, (vocab_size, embed_dim),
                                        jnp.float32, -0.5, 0.5),
        "fc_w": jax.random.uniform(k_w, (output_size, embed_dim),
                                   jnp.float32, -bound, bound),
        "fc_b": jax.random.uniform(k_b, (output_size,),
                                   jnp.float32, -bound, bound),
        "bn_gamma": jnp.ones((output_size,), jnp.float32),
        "bn_beta": jnp.zeros((output_size,), jnp.float32),
    }

    texts = jax.random.randint(k_idx, (batch, window * bag_size), 0, vocab_size,
                               dtype=jnp.int32)
    offsets = jnp.tile(jnp.arange(window, dtype=jnp.int32) * bag_size, (batch, 1))

    # One-time parameter fold (kept out of the per-call hot path).
    m_fold, ch, out_dim = prepare_params(params, bag_size=bag_size)
    m_fold = jax.block_until_ready(m_fold)

    y = cps_tcn_forward(texts, offsets, m_fold, ch,
                        bag_size=bag_size, out_dim=out_dim)
    y = jax.block_until_ready(y)

    y_ref = reference_forward(texts, params, bag_size)
    np.testing.assert_allclose(np.asarray(y), np.asarray(y_ref),
                               rtol=1e-4, atol=5e-5)

    print("KERNEL_OK")
</pallas_src>

<mosaic_0001>
module attributes {stable_mosaic.version = 11 : i64} {
  func.func @fused_forward_kernel(%arg0: memref<32x1xi32, #tpu.memory_space<vmem>>, %arg1: memref<64x128xf32, #tpu.memory_space<vmem>>, %arg2: memref<3x128xf32, #tpu.memory_space<vmem>>, %arg3: memref<8x128xf32, #tpu.memory_space<vmem>>) attributes {dimension_semantics = [], scalar_prefetch = 0 : i64, scratch_operands = 0 : i64, tpu.core_type = #tpu.core_type<tc>} {
    %c0 = arith.constant 0 : index
    %c0_0 = arith.constant 0 : index
    %0 = vector.load %arg0[%c0, %c0_0] : memref<32x1xi32, #tpu.memory_space<vmem>>, vector<32x1xi32>
    %1 = tpu.iota {dimensions = array<i32: 1>} : vector<32x64xi32>
    %2 = vector.broadcast %0 : vector<32x1xi32> to vector<32x64xi32>
    %3 = arith.cmpi eq, %1, %2 : vector<32x64xi32>
    %4 = arith.extui %3 : vector<32x64xi1> to vector<32x64xi32>
    %5 = arith.sitofp %4 : vector<32x64xi32> to vector<32x64xf32>
    %6 = tpu.iota {dimensions = array<i32: 0>} : vector<8x32xi32>
    %7 = tpu.iota {dimensions = array<i32: 1>} : vector<8x32xi32>
    %c4_i32 = arith.constant 4 : i32
    %8 = vector.broadcast %c4_i32 : i32 to vector<8x32xi32>
    %9 = arith.muli %6, %8 : vector<8x32xi32>
    %10 = arith.cmpi sge, %7, %9 : vector<8x32xi32>
    %c1_i32 = arith.constant 1 : i32
    %11 = vector.broadcast %c1_i32 : i32 to vector<8x32xi32>
    %12 = arith.addi %6, %11 : vector<8x32xi32>
    %c4_i32_1 = arith.constant 4 : i32
    %13 = vector.broadcast %c4_i32_1 : i32 to vector<8x32xi32>
    %14 = arith.muli %12, %13 : vector<8x32xi32>
    %15 = arith.cmpi slt, %7, %14 : vector<8x32xi32>
    %16 = arith.andi %10, %15 : vector<8x32xi1>
    %17 = arith.extui %16 : vector<8x32xi1> to vector<8x32xi32>
    %18 = arith.sitofp %17 : vector<8x32xi32> to vector<8x32xf32>
    %cst = arith.constant dense<0.000000e+00> : vector<8x64xf32>
    %19 = tpu.matmul %18, %5, %cst {dimension_numbers = #tpu.dot_dimension_numbers<[1], [0], [0], [1], [0, 0, 1, 1], [], []>} : vector<8x32xf32>, vector<32x64xf32>, vector<8x64xf32> -> vector<8x64xf32>
    %c0_2 = arith.constant 0 : index
    %c0_3 = arith.constant 0 : index
    %20 = vector.load %arg1[%c0_2, %c0_3] : memref<64x128xf32, #tpu.memory_space<vmem>>, vector<64x128xf32>
    %cst_4 = arith.constant dense<0.000000e+00> : vector<8x128xf32>
    %21 = tpu.matmul %19, %20, %cst_4 {dimension_numbers = #tpu.dot_dimension_numbers<[1], [0], [0], [1], [0, 0, 1, 1], [], []>} : vector<8x64xf32>, vector<64x128xf32>, vector<8x128xf32> -> vector<8x128xf32>
    %c0_5 = arith.constant 0 : index
    %c0_6 = arith.constant 0 : index
    %22 = vector.load %arg2[%c0_5, %c0_6] : memref<3x128xf32, #tpu.memory_space<vmem>>, vector<1x128xf32>
    %23 = vector.broadcast %22 : vector<1x128xf32> to vector<8x128xf32>
    %24 = arith.addf %21, %23 : vector<8x128xf32>
    %cst_7 = arith.constant dense<0.000000e+00> : vector<128xf32>
    %25 = vector.multi_reduction <add>, %24, %cst_7 [0] : vector<8x128xf32> to vector<128xf32>
    %26 = vector.shape_cast %25 : vector<128xf32> to vector<1x128xf32>
    %cst_8 = arith.constant 1.250000e-01 : f32
    %27 = vector.broadcast %cst_8 : f32 to vector<1x128xf32>
    %28 = arith.mulf %26, %27 : vector<1x128xf32>
    %29 = vector.broadcast %28 : vector<1x128xf32> to vector<8x128xf32>
    %30 = arith.subf %24, %29 : vector<8x128xf32>
    %31 = arith.mulf %30, %30 : vector<8x128xf32>
    %cst_9 = arith.constant dense<0.000000e+00> : vector<128xf32>
    %32 = vector.multi_reduction <add>, %31, %cst_9 [0] : vector<8x128xf32> to vector<128xf32>
    %33 = vector.shape_cast %32 : vector<128xf32> to vector<1x128xf32>
    %cst_10 = arith.constant 1.250000e-01 : f32
    %34 = vector.broadcast %cst_10 : f32 to vector<1x128xf32>
    %35 = arith.mulf %33, %34 : vector<1x128xf32>
    %c1 = arith.constant 1 : index
    %c0_11 = arith.constant 0 : index
    %36 = vector.load %arg2[%c1, %c0_11] : memref<3x128xf32, #tpu.memory_space<vmem>>, vector<1x128xf32>
    %cst_12 = arith.constant 9.99999974E-6 : f32
    %37 = vector.broadcast %cst_12 : f32 to vector<1x128xf32>
    %38 = arith.addf %35, %37 : vector<1x128xf32>
    %39 = math.rsqrt %38 : vector<1x128xf32>
    %40 = arith.mulf %36, %39 : vector<1x128xf32>
    %41 = vector.broadcast %40 : vector<1x128xf32> to vector<8x128xf32>
    %42 = arith.mulf %30, %41 : vector<8x128xf32>
    %c2 = arith.constant 2 : index
    %c0_13 = arith.constant 0 : index
    %43 = vector.load %arg2[%c2, %c0_13] : memref<3x128xf32, #tpu.memory_space<vmem>>, vector<1x128xf32>
    %44 = vector.broadcast %43 : vector<1x128xf32> to vector<8x128xf32>
    %45 = arith.addf %42, %44 : vector<8x128xf32>
    %cst_14 = arith.constant 0.000000e+00 : f32
    %46 = vector.broadcast %cst_14 : f32 to vector<8x128xf32>
    %47 = arith.maximumf %45, %46 : vector<8x128xf32>
    %c0_15 = arith.constant 0 : index
    %c0_16 = arith.constant 0 : index
    %48 = vector.load %arg3[%c0_15, %c0_16] : memref<8x128xf32, #tpu.memory_space<vmem>>, vector<8x128xf32>
    tpu.vector_store %arg3[%c0_15, %c0_16], %47 {strides = array<i32>} : memref<8x128xf32, #tpu.memory_space<vmem>>, vector<8x128xf32>,
    return
  }
}

</mosaic_0001>

<llo_original>
// kernel: cps_tcn_forward.1
$region0: #{cps_tcn_forward.1}
  #allocation0 [shape = 'u32[]', space=smem, size = 0x4, offset = 0x4, fixed_abs, tag = 'smem constant byte address 0x4 - core index']
  #allocation1 [shape = 'u32[72,128]{1,0:T(1,128)}', space=vmem, size = 0x9000, scoped, tag = 'internal scratch']
  %s0 = inlined_call_operand.vmem [shape: s32[32,1], index: 0, kind: input, shape index: {}]
  %s1 = inlined_call_operand.hbm [shape: f32[64,128], index: 1, kind: input, shape index: {}]
  %s2 = inlined_call_operand.vmem [shape: f32[3,128], index: 2, kind: input, shape index: {}]
  %s3 = inlined_call_operand.hbm [shape: f32[8,128], index: 3, kind: output, shape index: {}]
  %s4 = sld [smem:[#allocation0]]
  $region26: #{cps_tcn_forward.1} parent=0
    _
  %s6 = ssub.s32 1, %s4
  %s7 = scalar_select 0, %s6, %s4
  $region1: #{cps_tcn_forward.1} parent=0
    #allocation2 [shape = 'u8[32768]{0}', space=vmem, size = 0x8000, scoped, tag = 'input window, operand 1, single buffered']
    #allocation3 [shape = 's32[1]{0}', space=sflag, size = 0x4, scoped, tag = 'scoped memory for cps_tcn_forward.1']
    #allocation4 [shape = 's32[1]{0}', space=sflag, size = 0x4, scoped, tag = 'scoped memory for cps_tcn_forward.1']
    #allocation5 [shape = 'u8[4096]{0}', space=vmem, size = 0x1000, scoped, tag = 'output window, operand 0, single buffered']
    %8 = vsyncpa [#allocation3], 0
    %9 = vsyncpa [#allocation4], 0
    // Predicated region
    $region2: #{cps_tcn_forward.1} parent=1 // pred_check
      _
    $region3: #{cps_tcn_forward.1} parent=1 // pred_check_branch
      %11 = sbr.rel (0) target = $region5
    $region4: #{cps_tcn_forward.1} parent=1 // pred_region
      _
    $region5: #{cps_tcn_forward.1} parent=1 // pred_fallthru
      _
    // Predicated region
    $region6: #{cps_tcn_forward.1} parent=1 // pred_check
      _
    $region7: #{cps_tcn_forward.1} parent=1 // pred_check_branch
      %13 = sbr.rel (0) target = $region9
    $region8: #{cps_tcn_forward.1} parent=1 // pred_region
      %15 = vsyncadd [#allocation3], 0
      %s16 = sshll.u32 %s1, 4
      %s17 = int_to_ptr.hbm [resolvable:$true] %s16
      %s18 = sshll.u32 [#allocation2], 4
      %s19 = int_to_ptr.vmem [resolvable:$true] %s18
      %24 = dma.hbm_to_vmem [thread:$0]  %s17, 1024, %s19, [#allocation3], 128, 128, 8
    $region9: #{cps_tcn_forward.1} parent=1 // pred_fallthru
      _
    // Predicated region
    $region10: #{cps_tcn_forward.1} parent=1 // pred_check
      _
    $region11: #{cps_tcn_forward.1} parent=1 // pred_check_branch
      %26 = sbr.rel (0) target = $region13
    $region12: #{cps_tcn_forward.1} parent=1 // pred_region
      _
    $region13: #{cps_tcn_forward.1} parent=1 // pred_fallthru
      _
    // Predicated region
    $region14: #{cps_tcn_forward.1} parent=1 // pred_check
      _
    $region15: #{cps_tcn_forward.1} parent=1 // pred_check_branch
      %28 = sbr.rel (0) target = $region17
    $region16: #{cps_tcn_forward.1} parent=1 // pred_region
      %30 = dma.done [#allocation3], 1024
    $region17: #{cps_tcn_forward.1} parent=1 // pred_fallthru
      _
    %v31 = vld [vmem:[%s0] sm:$0xff]
    %v32 = vld [vmem:[%s0 + $0x8] sm:$0xff]
    %v33 = vld [vmem:[%s0 + $0x10] sm:$0xff]
    %v34 = vld [vmem:[%s0 + $0x18] sm:$0xff]
    %v35 = vlaneseq
    %v36 = vand.u32 %v35, 127
    %37 = vset.pattern.permute.xlu0 0
    %38 = vperm.xlu0 %37, %v31
    %v39 = vpop.permute.xlu0 %38
    %40 = vset.pattern.permute.xlu0 0
    %41 = vperm.xlu0 %40, %v32
    %v42 = vpop.permute.xlu0 %41
    %43 = vset.pattern.permute.xlu0 0
    %44 = vperm.xlu0 %43, %v33
    %v45 = vpop.permute.xlu0 %44
    %46 = vset.pattern.permute.xlu0 0
    %47 = vperm.xlu0 %46, %v34
    %v48 = vpop.permute.xlu0 %47
    %vm49 = vcmp.eq.s32.totalorder %v36, %v39
    %vm50 = vcmp.eq.s32.totalorder %v36, %v42
    %vm51 = vcmp.eq.s32.totalorder %v36, %v45
    %vm52 = vcmp.eq.s32.totalorder %v36, %v48
    %v53 = vsel %vm49, 1, 0
    %v54 = vsel %vm50, 1, 0
    %v55 = vsel %vm51, 1, 0
    %v56 = vsel %vm52, 1, 0
    %v57 = vcvt.s32.f32 %v53
    %v58 = vcvt.s32.f32 %v54
    %v59 = vcvt.s32.f32 %v55
    %v60 = vcvt.s32.f32 %v56
    %v61 = vlaneseq
    %v62 = vshrl.u32 %v61, 7
    %v63 = vmul.u32 %v62, 4
    %vm64 = vcmp.ge.s32.totalorder %v36, %v63
    %v65 = vadd.s32 %v62, 1
    %v66 = vmul.u32 %v65, 4
    %vm67 = vcmp.lt.s32.totalorder %v36, %v66
    %vm68 = vmand %vm64, %vm67
    %v69 = vsel %vm68, 1, 0
    %v70 = vcvt.s32.f32 %v69
    %vm71 = vcmask 261120
    %v73 = vsel %vm71, %v70, 0
    %75 = vmatpush.msra.mxu0 0.0
    %76 = vmatpush.msra.mxu0 0.0
    %77 = vmatpush.msra.mxu0 0.0
    %78 = vmatpush.msra.mxu0 0.0
    %79 = vmatpush.msra.mxu0 0.0
    %80 = vmatpush.msra.mxu0 0.0
    %81 = vmatpush.msra.mxu0 0.0
    %82 = vmatpush.msra.mxu0 0.0
    %83 = vmatpush.msra.mxu0 0.0
    %84 = vmatpush.msra.mxu0 0.0
    %85 = vmatpush.msra.mxu0 0.0
    %86 = vmatpush.msra.mxu0 0.0
    %87 = vmatpush.msra.mxu0 %v60
    %88 = vmatpush.msra.mxu0 %v59
    %89 = vmatpush.msra.mxu0 %v58
    %90 = vmatpush.msra.mxu0 %v57
    %91 = vmatmul.f32.gmra.mxu0 %v73
    %v92 = vpop.f32.mrf.mxu0
    %v93 = vadd.f32 0.0, %v92
    %94 = vdwg.mxu0
    %v95 = vld [vmem:[#allocation2] sm:$0xff]
    %v96 = vld [vmem:[#allocation2 + $0x8] sm:$0xff]
    %v97 = vld [vmem:[#allocation2 + $0x10] sm:$0xff]
    %v98 = vld [vmem:[#allocation2 + $0x18] sm:$0xff]
    %v99 = vld [vmem:[#allocation2 + $0x20] sm:$0xff]
    %v100 = vld [vmem:[#allocation2 + $0x28] sm:$0xff]
    %v101 = vld [vmem:[#allocation2 + $0x30] sm:$0xff]
    %v102 = vld [vmem:[#allocation2 + $0x38] sm:$0xff]
    %v103 = vld [vmem:[%s2] sm:$0x1]
    %v104 = vperm.slane %v103, 0
    %vm105 = vcmask 523264
    %v107 = vsel %vm105, %v93, 0
    %109 = vmatpush.msra.mxu0 0.0
    %110 = vmatpush.msra.mxu0 0.0
    %111 = vmatpush.msra.mxu0 0.0
    %112 = vmatpush.msra.mxu0 0.0
    %113 = vmatpush.msra.mxu0 0.0
    %114 = vmatpush.msra.mxu0 0.0
    %115 = vmatpush.msra.mxu0 0.0
    %116 = vmatpush.msra.mxu0 0.0
    %117 = vmatpush.msra.mxu0 %v102
    %118 = vmatpush.msra.mxu0 %v101
    %119 = vmatpush.msra.mxu0 %v100
    %120 = vmatpush.msra.mxu0 %v99
    %121 = vmatpush.msra.mxu0 %v98
    %122 = vmatpush.msra.mxu0 %v97
    %123 = vmatpush.msra.mxu0 %v96
    %124 = vmatpush.msra.mxu0 %v95
    %125 = vmatmul.f32.gmra.mxu0 %v107
    %v126 = vpop.f32.mrf.mxu0
    %v127 = vadd.f32 %v104, %v126
    %128 = vdwg.mxu0
    %v129 = vrot.slane %v127, 4
    %v130 = vadd.f32 %v127, %v129
    %v131 = vrot.slane %v130, 2
    %v132 = vadd.f32 %v130, %v131
    %v133 = vrot.slane %v132, 1
    %v134 = vadd.f32 %v132, %v133
    %v135 = vmul.f32 %v134, 0.125
    %v136 = vsub.f32 %v127, %v135
    %v137 = vmul.f32 %v136, %v136
    %v138 = vrot.slane %v137, 4
    %v139 = vadd.f32 %v137, %v138
    %v140 = vrot.slane %v139, 2
    %v141 = vadd.f32 %v139, %v140
    %v142 = vrot.slane %v141, 1
    %v143 = vadd.f32 %v141, %v142
    %v144 = vmul.f32 %v143, 0.125
    %v145 = vld [vmem:[%s2 + $0x1] sm:$0x1]
    %v146 = vadd.f32 %v144, 1e-05
    %v147 = vrsqrt.pop %v146
    %v148 = vmul.f32 %v147, %v146
    %v149 = vmul.f32 %v148, %v147
    %v150 = vmul.f32 0.5, %v149
    %v151 = vsub.f32 1.5, %v150
    %v152 = vmul.f32 %v147, %v151
    %vm153 = vweird.f32 %v146
    %vm154 = vweird.f32 %v147
    %vm155 = vmor %vm153, %vm154
    %v156 = vsel %vm155, %v147, %v152
    %v157 = vmul.f32 %v145, %v156
    %v158 = vperm.slane %v157, 0
    %v159 = vmul.f32 %v136, %v158
    %v160 = vld [vmem:[%s2 + $0x2] sm:$0x1]
    %v161 = vperm.slane %v160, 0
    %v162 = vadd.f32 %v159, %v161
    %v163 = vmax.f32 %v162, 0.0
    %164 = vst [vmem:[#allocation5] sm:$0xff] %v163
    // Predicated region
    $region18: #{cps_tcn_forward.1} parent=1 // pred_check
      _
    $region19: #{cps_tcn_forward.1} parent=1 // pred_check_branch
      %166 = sbr.rel (0) target = $region21
    $region20: #{cps_tcn_forward.1} parent=1 // pred_region
      %168 = vsyncadd [#allocation4], 0
      %s170 = sshll.u32 [#allocation5], 4
      %s171 = int_to_ptr.vmem [resolvable:$true] %s170
      %s172 = sshll.u32 %s3, 4
      %s173 = int_to_ptr.hbm [resolvable:$true] %s172
      %175 = dma.vmem_to_hbm [thread:$0]  %s171, 128, %s173, [#allocation4]
    $region21: #{cps_tcn_forward.1} parent=1 // pred_fallthru
      _
    // Predicated region
    $region22: #{cps_tcn_forward.1} parent=1 // pred_check
      _
    $region23: #{cps_tcn_forward.1} parent=1 // pred_check_branch
      %177 = sbr.rel (0) target = $region25
    $region24: #{cps_tcn_forward.1} parent=1 // pred_region
      %179 = dma.done [#allocation4], 128
    $region25: #{cps_tcn_forward.1} parent=1 // pred_fallthru
      _
    %180 = vsyncpa [#allocation3], 1
    %181 = vsyncpa [#allocation4], 1

</llo_original>
